<compile_context>
chip_gen: v7x
topology: tpu7x:2x2x1
jax: 0.10.0
libtpu: 0.0.40
codegen_flags: <defaults>
</compile_context>

<pallas_src>
import jax
import jax.numpy as jnp
from jax.experimental import pallas as pl
from jax.experimental.pallas import tpu as pltpu

_LANE = 128
_SUBLANE = 8


def _round_up(x, m):
    return ((x + m - 1) // m) * m


def _vmem_capacity_bytes():
    """Physical VMEM per core; conservative (v7x) fallback if the query fails."""
    try:
        info = pltpu.get_tpu_info()
        cap = getattr(info, "vmem_capacity_bytes", None)
        if cap:
            return int(cap)
    except Exception:
        pass
    return 64 * 1024 * 1024


def _linear_relu_kernel(impact_ref, w_ref, b_ref, out_ref):
    # MXU matmul with f32 accumulation; bias add + ReLU on the VPU in f32.
    y = jnp.dot(impact_ref[...], w_ref[...], preferred_element_type=jnp.float32)
    y = y + b_ref[...]
    out_ref[...] = jnp.maximum(y, 0.0).astype(out_ref.dtype)


def _aggregate_kernel(attn_ref, result_ref, source_ref, inv_denom_ref, out_ref):
    # attention @ result on the MXU (f32 accumulation), then a broadcast
    # multiply by the precomputed 1/denom and the (source + x)/2 blend in f32.
    collect = jnp.dot(attn_ref[...], result_ref[...],
                      preferred_element_type=jnp.float32)
    collect_avg = collect * inv_denom_ref[...]            # (TB, Cp) * (TB, 1)
    out_ref[...] = ((source_ref[...] + collect_avg) * 0.5).astype(out_ref.dtype)


def self_gcn_layer(source, impact, attention, weight, bias,
                   *, compute_dtype=jnp.bfloat16):
    """SelfGCNLayer forward.

    source:    (B, source_channel)                  float32
    impact:    (N, impact_channel)                  float32
    attention: (B, N)                               float32
    weight:    (source_channel, impact_channel)     nn.Linear weight
    bias:      (source_channel,)                    nn.Linear bias
    returns:   (B, source_channel)                  float32
    """
    f32 = jnp.float32
    B, N = attention.shape
    n_imp, c_in = impact.shape
    assert n_imp == N, "attention columns must match impact rows"
    c_out = weight.shape[0]
    c_pad = _round_up(c_out, _LANE)                 # lane-dense output columns

    cd_size = jnp.dtype(compute_dtype).itemsize
    sub = max(_SUBLANE, 32 // cd_size)              # packed-sublane rows (8/16/32)

    vmem_cap = _vmem_capacity_bytes()
    vmem_limit = min(int(0.75 * vmem_cap), 100 * 1024 * 1024)
    budget = int(0.5 * vmem_cap)                    # headroom for pipeline bufs

    # ---- N padding and linear-call row tile (HBM-bound: go big) -------------
    n_target = _round_up(N, _LANE)
    TN = min(2048, n_target)
    N_pad = _round_up(N, TN)                        # multiple of TN and of 128

    # ---- B padding and aggregate-call row tile from the VMEM budget ---------
    resident = 2 * N_pad * c_pad * cd_size          # `result` (counted x2, safe)
    per_row = (2 * N_pad * cd_size                  # attention, double-buffered
               + 4 * c_pad * 4                      # source + out, dbl-buf, f32
               + 2 * 4)                             # inv_denom
    avail = budget - resident
    tb = (avail // per_row) if avail > 0 else 0
    tb = (tb // sub) * sub
    if tb < sub:
        # TODO(synk): for graphs this large, add an inner "arbitrary" N-reduction
        # grid axis with a VMEM f32 accumulator instead of shrinking TB further.
        tb = sub
    tb = min(tb, 2048)
    if B >= 2 * sub:
        # Cap near B/2 so the grid has >=2 steps -> both v7x TensorCores work.
        tb = min(tb, _round_up((B + 1) // 2, sub))
    else:
        tb = min(tb, _round_up(B, sub))
    TB = max(sub, tb)
    B_pad = _round_up(B, TB)

    # ---- wrapper-side layout plumbing (pad, cast, precompute 1/denom) -------
    w_t = jnp.zeros((c_in, c_pad), compute_dtype).at[:, :c_out].set(
        weight.T.astype(compute_dtype))
    b_p = jnp.zeros((1, c_pad), f32).at[:, :c_out].set(
        bias.astype(f32).reshape(1, c_out))
    imp_p = jnp.zeros((N_pad, c_in), compute_dtype).at[:N, :].set(
        impact.astype(compute_dtype))
    attn_p = jnp.zeros((B_pad, N_pad), compute_dtype).at[:B, :N].set(
        attention.astype(compute_dtype))
    src_p = jnp.zeros((B_pad, c_pad), f32).at[:B, :c_out].set(source.astype(f32))
    # Full-row sum done once by XLA at memory bandwidth, in f32, and inverted so
    # the kernel does a broadcast-multiply instead of an XLU reduce + divide.
    inv_denom = 1.0 / (attention.astype(f32).sum(axis=1, keepdims=True) + 1e-7)
    inv_denom_p = jnp.zeros((B_pad, 1), f32).at[:B, :].set(inv_denom)

    cparams = pltpu.CompilerParams(
        dimension_semantics=("parallel",),          # shards grid across v7x TCs
        vmem_limit_bytes=vmem_limit,
    )

    # ---- call 1: result = relu(impact @ W^T + b)  -> (N_pad, c_pad) ----------
    result = pl.pallas_call(
        _linear_relu_kernel,
        out_shape=jax.ShapeDtypeStruct((N_pad, c_pad), compute_dtype),
        grid_spec=pltpu.PrefetchScalarGridSpec(
            num_scalar_prefetch=0,
            grid=(N_pad // TN,),
            in_specs=[
                pl.BlockSpec((TN, c_in), lambda i: (i, 0)),
                pl.BlockSpec((c_in, c_pad), lambda i: (0, 0)),   # VMEM-resident
                pl.BlockSpec((1, c_pad), lambda i: (0, 0)),      # VMEM-resident
            ],
            out_specs=pl.BlockSpec((TN, c_pad), lambda i: (i, 0)),
        ),
        compiler_params=cparams,
        cost_estimate=pl.CostEstimate(
            flops=2 * N_pad * c_in * c_pad,
            transcendentals=0,
            bytes_accessed=(N_pad * c_in + c_in * c_pad + N_pad * c_pad) * cd_size
                           + c_pad * 4,
        ),
    )(imp_p, w_t, b_p)

    # ---- call 2: out = (source + (attention @ result) * inv_denom) / 2 -------
    out_p = pl.pallas_call(
        _aggregate_kernel,
        out_shape=jax.ShapeDtypeStruct((B_pad, c_pad), f32),
        grid_spec=pltpu.PrefetchScalarGridSpec(
            num_scalar_prefetch=0,
            grid=(B_pad // TB,),
            in_specs=[
                pl.BlockSpec((TB, N_pad), lambda i: (i, 0)),     # attention tile
                pl.BlockSpec((N_pad, c_pad), lambda i: (0, 0)),  # result, resident
                pl.BlockSpec((TB, c_pad), lambda i: (i, 0)),     # source tile
                pl.BlockSpec((TB, 1), lambda i: (i, 0)),         # 1/denom tile
            ],
            out_specs=pl.BlockSpec((TB, c_pad), lambda i: (i, 0)),
        ),
        compiler_params=cparams,
        cost_estimate=pl.CostEstimate(
            flops=2 * B_pad * N_pad * c_pad + 3 * B_pad * c_pad,
            transcendentals=0,
            bytes_accessed=(B_pad * N_pad + N_pad * c_pad) * cd_size
                           + (2 * B_pad * c_pad + B_pad) * 4,
        ),
    )(attn_p, result, src_p, inv_denom_p)

    return out_p[:B, :c_out]


def reference(source, impact, attention, weight, bias):
    result = jax.nn.relu(impact @ weight.T + bias)
    collect = attention @ result
    denom = attention.sum(1, keepdims=True) + 1e-7
    return (source + collect / denom) / 2.0


if __name__ == "__main__":
    key = jax.random.PRNGKey(0)
    k_src, k_imp, k_attn, k_w, k_b = jax.random.split(key, 5)

    source_channel = 16
    impact_channel = 32
    n_nodes = 8     # rows of impact / columns of attention
    b_rows = 8      # rows of source & attention (and of the output)

    source = jax.random.normal(k_src, (b_rows, source_channel), dtype=jnp.float32)
    impact = jax.random.normal(k_imp, (n_nodes, impact_channel), dtype=jnp.float32)
    attention = jax.random.uniform(k_attn, (b_rows, n_nodes), dtype=jnp.float32)

    # Deterministic nn.Linear-style params (synthetic, not a checkpoint load).
    limit = 1.0 / (impact_channel ** 0.5)
    weight = jax.random.uniform(k_w, (source_channel, impact_channel),
                                minval=-limit, maxval=limit, dtype=jnp.float32)
    bias = jax.random.uniform(k_b, (source_channel,),
                              minval=-limit, maxval=limit, dtype=jnp.float32)

    ref = reference(source, impact, attention, weight, bias)

    # f32 path: tight check against the pure-JAX reference.
    out_f32 = jax.block_until_ready(
        self_gcn_layer(source, impact, attention, weight, bias,
                       compute_dtype=jnp.float32))
    assert out_f32.shape == (b_rows, source_channel)
    assert jnp.allclose(out_f32, ref, atol=1e-5, rtol=1e-5), "f32 mismatch"

    # Default (bf16 matmul operands / bf16 `result` HBM round trip) path:
    # looser tolerance accounts for bf16 operand quantization.
    out_bf16 = jax.block_until_ready(
        self_gcn_layer(source, impact, attention, weight, bias))
    assert out_bf16.shape == (b_rows, source_channel)
    assert jnp.allclose(out_bf16, ref, atol=3e-2, rtol=3e-2), "bf16 mismatch"

    print("KERNEL_OK")
</pallas_src>

<mosaic_0001>
module attributes {stable_mosaic.version = 11 : i64} {
  func.func @_linear_relu_kernel(%arg0: i32, %arg1: memref<128x32xf32, #tpu.memory_space<vmem>>, %arg2: memref<32x128xf32, #tpu.memory_space<vmem>>, %arg3: memref<1x128xf32, #tpu.memory_space<vmem>>, %arg4: memref<128x128xf32, #tpu.memory_space<vmem>>) attributes {dimension_semantics = [#tpu.dimension_semantics<parallel>], iteration_bounds = array<i64: 1>, scalar_prefetch = 0 : i64, scratch_operands = 0 : i64, tpu.core_type = #tpu.core_type<tc>, window_params = [{transform_indices = @transform_0, window_bounds = array<i64: 128, 32>}, {pipeline_mode = #tpu.pipeline_mode<synchronous>, transform_indices = @transform_1, window_bounds = array<i64: 32, 128>}, {pipeline_mode = #tpu.pipeline_mode<synchronous>, transform_indices = @transform_2, window_bounds = array<i64: 1, 128>}, {transform_indices = @transform_3, window_bounds = array<i64: 128, 128>}]} {
    %c0 = arith.constant 0 : index
    %c0_0 = arith.constant 0 : index
    %0 = vector.load %arg1[%c0, %c0_0] : memref<128x32xf32, #tpu.memory_space<vmem>>, vector<128x32xf32>
    %c0_1 = arith.constant 0 : index
    %c0_2 = arith.constant 0 : index
    %1 = vector.load %arg2[%c0_1, %c0_2] : memref<32x128xf32, #tpu.memory_space<vmem>>, vector<32x128xf32>
    %cst = arith.constant dense<0.000000e+00> : vector<128x128xf32>
    %2 = tpu.matmul %0, %1, %cst {dimension_numbers = #tpu.dot_dimension_numbers<[1], [0], [0], [1], [0, 0, 1, 1], [], []>} : vector<128x32xf32>, vector<32x128xf32>, vector<128x128xf32> -> vector<128x128xf32>
    %c0_3 = arith.constant 0 : index
    %c0_4 = arith.constant 0 : index
    %3 = vector.load %arg3[%c0_3, %c0_4] : memref<1x128xf32, #tpu.memory_space<vmem>>, vector<1x128xf32>
    %4 = vector.broadcast %3 : vector<1x128xf32> to vector<128x128xf32>
    %5 = arith.addf %2, %4 : vector<128x128xf32>
    %cst_5 = arith.constant 0.000000e+00 : f32
    %6 = vector.broadcast %cst_5 : f32 to vector<128x128xf32>
    %7 = arith.maximumf %5, %6 : vector<128x128xf32>
    %c0_6 = arith.constant 0 : index
    %c0_7 = arith.constant 0 : index
    %8 = vector.load %arg4[%c0_6, %c0_7] : memref<128x128xf32, #tpu.memory_space<vmem>>, vector<128x128xf32>
    tpu.vector_store %arg4[%c0_6, %c0_7], %7 {strides = array<i32>} : memref<128x128xf32, #tpu.memory_space<vmem>>, vector<128x128xf32>,
    return
  }
  func.func @transform_0(%arg0: i32) -> (i32, i32) {
    %c0_i32 = arith.constant 0 : i32
    %c0_i32_0 = arith.constant 0 : i32
    return %arg0, %c0_i32 : i32, i32
  }
  func.func @transform_1(%arg0: i32) -> (i32, i32) {
    %c0_i32 = arith.constant 0 : i32
    %c0_i32_0 = arith.constant 0 : i32
    %c0_i32_1 = arith.constant 0 : i32
    return %c0_i32, %c0_i32_0 : i32, i32
  }
  func.func @transform_2(%arg0: i32) -> (i32, i32) {
    %c0_i32 = arith.constant 0 : i32
    %c0_i32_0 = arith.constant 0 : i32
    %c0_i32_1 = arith.constant 0 : i32
    return %c0_i32, %c0_i32_0 : i32, i32
  }
  func.func @transform_3(%arg0: i32) -> (i32, i32) {
    %c0_i32 = arith.constant 0 : i32
    %c0_i32_0 = arith.constant 0 : i32
    return %arg0, %c0_i32 : i32, i32
  }
}

</mosaic_0001>

<llo_original>
// kernel: tpu_custom_call.1
$region0: #{tpu_custom_call.1}
  #allocation0 [shape = 'u32[]', space=smem, size = 0x4, offset = 0x4, fixed_abs, tag = 'smem constant byte address 0x4 - core index']
  #allocation1 [shape = 'u32[144,128]{1,0:T(1,128)}', space=vmem, size = 0x12000, scoped, tag = 'internal scratch']
  %s0 = inlined_call_operand.vmem [shape: f32[128,32], index: 0, kind: input, shape index: {}]
  %s1 = inlined_call_operand.vmem [shape: f32[32,128], index: 1, kind: input, shape index: {}]
  %s2 = inlined_call_operand.vmem [shape: f32[1,128], index: 2, kind: input, shape index: {}]
  %s3 = inlined_call_operand.hbm [shape: f32[128,128], index: 3, kind: output, shape index: {}]
  %s4 = sld [smem:[#allocation0]]
  $region22: #{tpu_custom_call.1} parent=0
    _
  %s6 = ssub.s32 1, %s4
  %s7 = scalar_select 0, %s6, %s4
  $region1: #{tpu_custom_call.1} parent=0
    #allocation2 [shape = 'u8[65536]{0}', space=vmem, size = 0x10000, scoped, tag = 'output window, operand 0, single buffered']
    #allocation3 [shape = 's32[1]{0}', space=sflag, size = 0x4, scoped, tag = 'scoped memory for tpu_custom_call.1']
    %8 = vsyncpa [#allocation3], 0
    // Predicated region
    $region2: #{tpu_custom_call.1} parent=1 // pred_check
      _
    $region3: #{tpu_custom_call.1} parent=1 // pred_check_branch
      %10 = sbr.rel (0) target = $region5
    $region4: #{tpu_custom_call.1} parent=1 // pred_region
      _
    $region5: #{tpu_custom_call.1} parent=1 // pred_fallthru
      _
    // Predicated region
    $region6: #{tpu_custom_call.1} parent=1 // pred_check
      _
    $region7: #{tpu_custom_call.1} parent=1 // pred_check_branch
      %12 = sbr.rel (0) target = $region9
    $region8: #{tpu_custom_call.1} parent=1 // pred_region
      _
    $region9: #{tpu_custom_call.1} parent=1 // pred_fallthru
      _
    // Predicated region
    $region10: #{tpu_custom_call.1} parent=1 // pred_check
      _
    $region11: #{tpu_custom_call.1} parent=1 // pred_check_branch
      %14 = sbr.rel (0) target = $region13
    $region12: #{tpu_custom_call.1} parent=1 // pred_region
      _
    $region13: #{tpu_custom_call.1} parent=1 // pred_fallthru
      _
    %v15 = vld [vmem:[%s0] sm:$0xff]
    %v16 = vld [vmem:[%s0 + $0x8] sm:$0xff]
    %v17 = vld [vmem:[%s0 + $0x10] sm:$0xff]
    %v18 = vld [vmem:[%s0 + $0x18] sm:$0xff]
    %v19 = vld [vmem:[%s0 + $0x20] sm:$0xff]
    %v20 = vld [vmem:[%s0 + $0x28] sm:$0xff]
    %v21 = vld [vmem:[%s0 + $0x30] sm:$0xff]
    %v22 = vld [vmem:[%s0 + $0x38] sm:$0xff]
    %v23 = vld [vmem:[%s0 + $0x40] sm:$0xff]
    %v24 = vld [vmem:[%s0 + $0x48] sm:$0xff]
    %v25 = vld [vmem:[%s0 + $0x50] sm:$0xff]
    %v26 = vld [vmem:[%s0 + $0x58] sm:$0xff]
    %v27 = vld [vmem:[%s0 + $0x60] sm:$0xff]
    %v28 = vld [vmem:[%s0 + $0x68] sm:$0xff]
    %v29 = vld [vmem:[%s0 + $0x70] sm:$0xff]
    %v30 = vld [vmem:[%s0 + $0x78] sm:$0xff]
    %v31 = vld [vmem:[%s1] sm:$0xff]
    %v32 = vld [vmem:[%s1 + $0x8] sm:$0xff]
    %v33 = vld [vmem:[%s1 + $0x10] sm:$0xff]
    %v34 = vld [vmem:[%s1 + $0x18] sm:$0xff]
    %v35 = vld [vmem:[%s2] sm:$0x1]
    %v37 = vlaneseq
    %v38 = vshrl.u32 %v37, 7
    %v39 = vsub.s32 0, %v38
    %v40 = vrot.slane %v35, %v39
    %vm42 = vcmask 261120
    %v44 = vsel %vm42, %v15, 0
    %v47 = vsel %vm42, %v16, 0
    %v50 = vsel %vm42, %v17, 0
    %v53 = vsel %vm42, %v18, 0
    %v56 = vsel %vm42, %v19, 0
    %v59 = vsel %vm42, %v20, 0
    %v62 = vsel %vm42, %v21, 0
    %v65 = vsel %vm42, %v22, 0
    %v68 = vsel %vm42, %v23, 0
    %v71 = vsel %vm42, %v24, 0
    %v74 = vsel %vm42, %v25, 0
    %v77 = vsel %vm42, %v26, 0
    %v80 = vsel %vm42, %v27, 0
    %v83 = vsel %vm42, %v28, 0
    %v86 = vsel %vm42, %v29, 0
    %v89 = vsel %vm42, %v30, 0
    %91 = vmatprep.subr.mxu0 0.0
    %92 = vmatpush1.msra.mxu0 %v31
    %93 = vmatprep.subr.mxu0 0.0
    %94 = vmatpush1.msra.mxu0 %v32
    %95 = vmatprep.subr.mxu0 0.0
    %96 = vmatpush1.msra.mxu0 %v33
    %97 = vmatprep.subr.mxu0 0.0
    %98 = vmatpush1.msra.mxu0 %v34
    %99 = vmatprep.subr.mxu0 0.0
    %100 = vmatpush1.msra.mxu0 0.0
    %101 = vmatprep.subr.mxu0 0.0
    %102 = vmatpush1.msra.mxu0 0.0
    %103 = vmatprep.subr.mxu0 0.0
    %104 = vmatpush1.msra.mxu0 0.0
    %105 = vmatprep.subr.mxu0 0.0
    %106 = vmatpush1.msra.mxu0 0.0
    %107 = vmatprep.subr.mxu0 0.0
    %108 = vmatpush1.msra.mxu0 0.0
    %109 = vmatprep.subr.mxu0 0.0
    %110 = vmatpush1.msra.mxu0 0.0
    %111 = vmatprep.subr.mxu0 0.0
    %112 = vmatpush1.msra.mxu0 0.0
    %113 = vmatprep.subr.mxu0 0.0
    %114 = vmatpush1.msra.mxu0 0.0
    %115 = vmatprep.subr.mxu0 0.0
    %116 = vmatpush1.msra.mxu0 0.0
    %117 = vmatprep.subr.mxu0 0.0
    %118 = vmatpush1.msra.mxu0 0.0
    %119 = vmatprep.subr.mxu0 0.0
    %120 = vmatpush1.msra.mxu0 0.0
    %121 = vmatprep.subr.mxu0 0.0
    %122 = vmatpush1.msra.mxu0 0.0
    %123 = vmatprep.subr.mxu0 0.0
    %124 = vmatpush1.msra.mxu0 0.0
    %125 = vmatprep.subr.mxu0 0.0
    %126 = vmatpush1.msra.mxu0 0.0
    %127 = vmatprep.subr.mxu0 0.0
    %128 = vmatpush1.msra.mxu0 0.0
    %129 = vmatprep.subr.mxu0 0.0
    %130 = vmatpush1.msra.mxu0 0.0
    %131 = vmatprep.subr.mxu0 0.0
    %132 = vmatpush1.msra.mxu0 0.0
    %133 = vmatprep.subr.mxu0 0.0
    %134 = vmatpush1.msra.mxu0 0.0
    %135 = vmatprep.subr.mxu0 0.0
    %136 = vmatpush1.msra.mxu0 0.0
    %137 = vmatprep.subr.mxu0 0.0
    %138 = vmatpush1.msra.mxu0 0.0
    %139 = vmatprep.subr.mxu0 0.0
    %140 = vmatpush1.msra.mxu0 0.0
    %141 = vmatprep.subr.mxu0 0.0
    %142 = vmatpush1.msra.mxu0 0.0
    %143 = vmatprep.subr.mxu0 0.0
    %144 = vmatpush1.msra.mxu0 0.0
    %145 = vmatprep.subr.mxu0 0.0
    %146 = vmatpush1.msra.mxu0 0.0
    %147 = vmatprep.subr.mxu0 0.0
    %148 = vmatpush1.msra.mxu0 0.0
    %149 = vmatprep.subr.mxu0 0.0
    %150 = vmatpush1.msra.mxu0 0.0
    %151 = vmatprep.subr.mxu0 0.0
    %152 = vmatpush1.msra.mxu0 0.0
    %153 = vmatprep.subr.mxu0 0.0
    %154 = vmatpush1.msra.mxu0 0.0
    %155 = vmatprep.mubr.f32.mxu0 0.0
    %156 = vmatmul.mubr.f32.gmra.mrb[0].mxu0 %v44
    %v157 = vpop.f32.mrb[0].mxu0
    %v158 = vadd.f32 %v40, %v157
    %v159 = vpop.f32.mrb[0].mxu0
    %160 = vmatprep.mubr.f32.mxu0 0.0
    %161 = vmatmul.mubr.f32.gmra.mrb[0].mxu0 %v47
    %v162 = vpop.f32.mrb[0].mxu0
    %v163 = vadd.f32 %v40, %v162
    %v164 = vpop.f32.mrb[0].mxu0
    %165 = vmatprep.mubr.f32.mxu0 0.0
    %166 = vmatmul.mubr.f32.gmra.mrb[0].mxu0 %v50
    %v167 = vpop.f32.mrb[0].mxu0
    %v168 = vadd.f32 %v40, %v167
    %v169 = vpop.f32.mrb[0].mxu0
    %170 = vmatprep.mubr.f32.mxu0 0.0
    %171 = vmatmul.mubr.f32.gmra.mrb[0].mxu0 %v53
    %v172 = vpop.f32.mrb[0].mxu0
    %v173 = vadd.f32 %v40, %v172
    %v174 = vpop.f32.mrb[0].mxu0
    %175 = vmatprep.mubr.f32.mxu0 0.0
    %176 = vmatmul.mubr.f32.gmra.mrb[0].mxu0 %v56
    %v177 = vpop.f32.mrb[0].mxu0
    %v178 = vadd.f32 %v40, %v177
    %v179 = vpop.f32.mrb[0].mxu0
    %180 = vmatprep.mubr.f32.mxu0 0.0
    %181 = vmatmul.mubr.f32.gmra.mrb[0].mxu0 %v59
    %v182 = vpop.f32.mrb[0].mxu0
    %v183 = vadd.f32 %v40, %v182
    %v184 = vpop.f32.mrb[0].mxu0
    %185 = vmatprep.mubr.f32.mxu0 0.0
    %186 = vmatmul.mubr.f32.gmra.mrb[0].mxu0 %v62
    %v187 = vpop.f32.mrb[0].mxu0
    %v188 = vadd.f32 %v40, %v187
    %v189 = vpop.f32.mrb[0].mxu0
    %190 = vmatprep.mubr.f32.mxu0 0.0
    %191 = vmatmul.mubr.f32.gmra.mrb[0].mxu0 %v65
    %v192 = vpop.f32.mrb[0].mxu0
    %v193 = vadd.f32 %v40, %v192
    %v194 = vpop.f32.mrb[0].mxu0
    %195 = vmatprep.mubr.f32.mxu0 0.0
    %196 = vmatmul.mubr.f32.gmra.mrb[0].mxu0 %v68
    %v197 = vpop.f32.mrb[0].mxu0
    %v198 = vadd.f32 %v40, %v197
    %v199 = vpop.f32.mrb[0].mxu0
    %200 = vmatprep.mubr.f32.mxu0 0.0
    %201 = vmatmul.mubr.f32.gmra.mrb[0].mxu0 %v71
    %v202 = vpop.f32.mrb[0].mxu0
    %v203 = vadd.f32 %v40, %v202
    %v204 = vpop.f32.mrb[0].mxu0
    %205 = vmatprep.mubr.f32.mxu0 0.0
    %206 = vmatmul.mubr.f32.gmra.mrb[0].mxu0 %v74
    %v207 = vpop.f32.mrb[0].mxu0
    %v208 = vadd.f32 %v40, %v207
    %v209 = vpop.f32.mrb[0].mxu0
    %210 = vmatprep.mubr.f32.mxu0 0.0
    %211 = vmatmul.mubr.f32.gmra.mrb[0].mxu0 %v77
    %v212 = vpop.f32.mrb[0].mxu0
    %v213 = vadd.f32 %v40, %v212
    %v214 = vpop.f32.mrb[0].mxu0
    %215 = vmatprep.mubr.f32.mxu0 0.0
    %216 = vmatmul.mubr.f32.gmra.mrb[0].mxu0 %v80
    %v217 = vpop.f32.mrb[0].mxu0
    %v218 = vadd.f32 %v40, %v217
    %v219 = vpop.f32.mrb[0].mxu0
    %220 = vmatprep.mubr.f32.mxu0 0.0
    %221 = vmatmul.mubr.f32.gmra.mrb[0].mxu0 %v83
    %v222 = vpop.f32.mrb[0].mxu0
    %v223 = vadd.f32 %v40, %v222
    %v224 = vpop.f32.mrb[0].mxu0
    %225 = vmatprep.mubr.f32.mxu0 0.0
    %226 = vmatmul.mubr.f32.gmra.mrb[0].mxu0 %v86
    %v227 = vpop.f32.mrb[0].mxu0
    %v228 = vadd.f32 %v40, %v227
    %v229 = vpop.f32.mrb[0].mxu0
    %230 = vmatprep.mubr.f32.mxu0 0.0
    %231 = vmatmul.mubr.f32.gmra.mrb[0].mxu0 %v89
    %v232 = vpop.f32.mrb[0].mxu0
    %v233 = vadd.f32 %v40, %v232
    %v234 = vpop.f32.mrb[0].mxu0
    %235 = vdwg.mxu0
    %v236 = vmax.f32 %v158, 0.0
    %v237 = vmax.f32 %v163, 0.0
    %v238 = vmax.f32 %v168, 0.0
    %v239 = vmax.f32 %v173, 0.0
    %v240 = vmax.f32 %v178, 0.0
    %v241 = vmax.f32 %v183, 0.0
    %v242 = vmax.f32 %v188, 0.0
    %v243 = vmax.f32 %v193, 0.0
    %v244 = vmax.f32 %v198, 0.0
    %v245 = vmax.f32 %v203, 0.0
    %v246 = vmax.f32 %v208, 0.0
    %v247 = vmax.f32 %v213, 0.0
    %v248 = vmax.f32 %v218, 0.0
    %v249 = vmax.f32 %v223, 0.0
    %v250 = vmax.f32 %v228, 0.0
    %v251 = vmax.f32 %v233, 0.0
    %252 = vst [vmem:[#allocation2] sm:$0xff] %v236
    %253 = vst [vmem:[#allocation2 + $0x8] sm:$0xff] %v237
    %254 = vst [vmem:[#allocation2 + $0x10] sm:$0xff] %v238
    %255 = vst [vmem:[#allocation2 + $0x18] sm:$0xff] %v239
    %256 = vst [vmem:[#allocation2 + $0x20] sm:$0xff] %v240
    %257 = vst [vmem:[#allocation2 + $0x28] sm:$0xff] %v241
    %258 = vst [vmem:[#allocation2 + $0x30] sm:$0xff] %v242
    %259 = vst [vmem:[#allocation2 + $0x38] sm:$0xff] %v243
    %260 = vst [vmem:[#allocation2 + $0x40] sm:$0xff] %v244
    %261 = vst [vmem:[#allocation2 + $0x48] sm:$0xff] %v245
    %262 = vst [vmem:[#allocation2 + $0x50] sm:$0xff] %v246
    %263 = vst [vmem:[#allocation2 + $0x58] sm:$0xff] %v247
    %264 = vst [vmem:[#allocation2 + $0x60] sm:$0xff] %v248
    %265 = vst [vmem:[#allocation2 + $0x68] sm:$0xff] %v249
    %266 = vst [vmem:[#allocation2 + $0x70] sm:$0xff] %v250
    %267 = vst [vmem:[#allocation2 + $0x78] sm:$0xff] %v251
    // Predicated region
    $region14: #{tpu_custom_call.1} parent=1 // pred_check
      _
    $region15: #{tpu_custom_call.1} parent=1 // pred_check_branch
      %269 = sbr.rel (0) target = $region17
    $region16: #{tpu_custom_call.1} parent=1 // pred_region
      %s271 = ssub.s32 2048, 2048
      %272 = vsyncadd [#allocation3], %s271
      %s273 = sshll.u32 [#allocation2], 4
      %s274 = int_to_ptr.vmem [resolvable:$true] %s273
      %279 = dma.vmem_to_hbm [thread:$0]  %s274, 2048, %s3, [#allocation3], 128, 128, 8
    $region17: #{tpu_custom_call.1} parent=1 // pred_fallthru
      _
    // Predicated region
    $region18: #{tpu_custom_call.1} parent=1 // pred_check
      _
    $region19: #{tpu_custom_call.1} parent=1 // pred_check_branch
      %281 = sbr.rel (0) target = $region21
    $region20: #{tpu_custom_call.1} parent=1 // pred_region
      %282 = dma.done [#allocation3], 2048
    $region21: #{tpu_custom_call.1} parent=1 // pred_fallthru
      _
    %283 = vsyncpa [#allocation3], 1

</llo_original>
